<compile_context>
chip_gen: v7x
topology: tpu7x:2x2x1
jax: 0.10.0
libtpu: 0.0.40
codegen_flags: <defaults>
</compile_context>

<pallas_src>
import functools

import jax
import jax.numpy as jnp
from jax import lax
from jax.experimental import pallas as pl
from jax.experimental.pallas import tpu as pltpu

NUM_CLASSES = 10
LANES = 128          # vreg lane width: lane-dense output -> unmasked vst
SUBLANES_F32 = 8     # vreg sublane width at 32-bit


def _sublanes_for(dtype):
    """Packed sublane tile height for a dtype: 8 (f32), 16 (bf16), 32 (int8)."""
    itemsize = jnp.dtype(dtype).itemsize
    return SUBLANES_F32 * max(1, 4 // itemsize)


def _one_hot_kernel(labels_ref, out_ref, *, num_classes):
    # labels_ref: (B, 1)            int32    in VMEM (whole array, no grid)
    # out_ref:    (B_pad, lanes)    f32/bf16 in VMEM (lane- and sublane-dense)
    b = labels_ref.shape[0]
    b_pad, lanes = out_ref.shape

    lab = labels_ref[...]                                   # (B, 1) int32
    if b != b_pad:
        # Pad the batch axis in-register with -1 (never matches any class id)
        # so the single output store is a full unmasked block.
        lab = jnp.concatenate(
            [lab, jnp.full((b_pad - b, 1), -1, jnp.int32)], axis=0)

    class_ids = lax.broadcasted_iota(jnp.int32, (b_pad, lanes), dimension=1)
    # int32 broadcast-compare on the VPU; the extra `< num_classes` guard keeps
    # padded lanes all-zero even for out-of-range labels (matters when the
    # padded block is returned directly).
    onehot = (lab == class_ids) & (class_ids < num_classes)
    out_ref[...] = onehot.astype(out_ref.dtype)              # one full vst block


def one_hot_pallas(labels, num_classes=NUM_CLASSES, dtype=jnp.float32,
                   pad_output=False):
    """Equivalent of torch.nn.functional.one_hot(labels, num_classes).float().

    Labels outside [0, num_classes) yield all-zero rows (jax.nn.one_hot
    semantics); torch would raise instead.  cDCGAN labels are always in-range.

    pad_output=True returns the lane/sublane-padded (B_pad, 128) block
    unsliced, for feeding a consumer whose class-axis weights are zero-padded
    to 128 (keeps the contraction MXU-native and avoids a non-fusing slice).
    """
    b = labels.shape[0]
    sub = _sublanes_for(dtype)
    b_pad = max(sub, ((b + sub - 1) // sub) * sub)
    lanes = max(LANES, ((num_classes + LANES - 1) // LANES) * LANES)

    # No jnp.pad here: just dtype cast + reshape (no extra HBM buffer/dispatch).
    labels2d = labels.astype(jnp.int32).reshape(b, 1)

    out_padded = pl.pallas_call(
        functools.partial(_one_hot_kernel, num_classes=num_classes),
        out_shape=jax.ShapeDtypeStruct((b_pad, lanes), dtype),
        # Whole-array blocks in VMEM, no grid -> no per-step pipeline overhead.
        in_specs=[pl.BlockSpec(memory_space=pltpu.MemorySpace.VMEM)],
        out_specs=pl.BlockSpec(memory_space=pltpu.MemorySpace.VMEM),
    )(labels2d)

    if pad_output:
        return out_padded
    # Trivial slice for exact torch semantics; XLA fuses it into a plain-XLA
    # consumer.  Use pad_output=True if the consumer is another Pallas kernel.
    return out_padded[:b, :num_classes]


class Lambda:
    """JAX port of the PyTorch Lambda module: applies `func` in forward()."""

    def __init__(self, func):
        self.func = func

    def __call__(self, x):
        return self.func(x)


if __name__ == "__main__":
    key = jax.random.PRNGKey(0)
    batch = 8
    labels = jax.random.randint(key, (batch,), 0, NUM_CLASSES, dtype=jnp.int32)

    # Lambda(lambda x: one_hot(x, NUM_CLASSES).float()) as used in cDCGAN.
    module = Lambda(lambda x: one_hot_pallas(x, NUM_CLASSES))

    out = jax.block_until_ready(module(labels))

    # Correctness check against plain JAX reference.
    ref = jax.nn.one_hot(labels, NUM_CLASSES, dtype=jnp.float32)
    assert out.shape == (batch, NUM_CLASSES)
    assert out.dtype == jnp.float32
    assert bool(jnp.all(out == ref))

    # Fused-consumer variant: lane-padded bf16 block, no wrapper slice
    # (exercises the in-kernel sublane-pad path: 8 rows -> 16 for bf16).
    out_pad = jax.block_until_ready(
        one_hot_pallas(labels, NUM_CLASSES, dtype=jnp.bfloat16, pad_output=True))
    assert out_pad.shape == (16, 128)
    assert out_pad.dtype == jnp.bfloat16
    ref_pad = jnp.zeros(out_pad.shape, jnp.bfloat16).at[:batch, :NUM_CLASSES].set(
        jax.nn.one_hot(labels, NUM_CLASSES, dtype=jnp.bfloat16))
    assert bool(jnp.all(out_pad == ref_pad))

    print("KERNEL_OK")
</pallas_src>

<mosaic_0001>
module attributes {stable_mosaic.version = 11 : i64} {
  func.func @_one_hot_kernel(%arg0: memref<8x1xi32, #tpu.memory_space<vmem>>, %arg1: memref<8x128xf32, #tpu.memory_space<vmem>>) attributes {dimension_semantics = [], scalar_prefetch = 0 : i64, scratch_operands = 0 : i64, tpu.core_type = #tpu.core_type<tc>} {
    %c0 = arith.constant 0 : index
    %c0_0 = arith.constant 0 : index
    %0 = vector.load %arg0[%c0, %c0_0] : memref<8x1xi32, #tpu.memory_space<vmem>>, vector<8x1xi32>
    %1 = tpu.iota {dimensions = array<i32: 1>} : vector<8x128xi32>
    %2 = vector.broadcast %0 : vector<8x1xi32> to vector<8x128xi32>
    %3 = arith.cmpi eq, %2, %1 : vector<8x128xi32>
    %c10_i32 = arith.constant 10 : i32
    %4 = vector.broadcast %c10_i32 : i32 to vector<8x128xi32>
    %5 = arith.cmpi slt, %1, %4 : vector<8x128xi32>
    %6 = arith.andi %3, %5 : vector<8x128xi1>
    %7 = arith.extui %6 : vector<8x128xi1> to vector<8x128xi32>
    %8 = arith.sitofp %7 : vector<8x128xi32> to vector<8x128xf32>
    %c0_1 = arith.constant 0 : index
    %c0_2 = arith.constant 0 : index
    %9 = vector.load %arg1[%c0_1, %c0_2] : memref<8x128xf32, #tpu.memory_space<vmem>>, vector<8x128xf32>
    tpu.vector_store %arg1[%c0_1, %c0_2], %8 {strides = array<i32>} : memref<8x128xf32, #tpu.memory_space<vmem>>, vector<8x128xf32>,
    return
  }
}

</mosaic_0001>

<llo_original>
// kernel: tpu_custom_call.1
$region0: #{tpu_custom_call.1}
  #allocation0 [shape = 'u32[]', space=smem, size = 0x4, offset = 0x4, fixed_abs, tag = 'smem constant byte address 0x4 - core index']
  #allocation1 [shape = 'u32[144,128]{1,0:T(1,128)}', space=vmem, size = 0x12000, scoped, tag = 'internal scratch']
  %s0 = inlined_call_operand.vmem [shape: s32[8,1], index: 0, kind: input, shape index: {}]
  %s1 = inlined_call_operand.hbm [shape: f32[8,128], index: 1, kind: output, shape index: {}]
  %s2 = sld [smem:[#allocation0]]
  $region14: #{tpu_custom_call.1} parent=0
    _
  %s4 = ssub.s32 1, %s2
  %s5 = scalar_select 0, %s4, %s2
  $region1: #{tpu_custom_call.1} parent=0
    #allocation2 [shape = 'u8[4096]{0}', space=vmem, size = 0x1000, scoped, tag = 'output window, operand 0, single buffered']
    #allocation3 [shape = 's32[1]{0}', space=sflag, size = 0x4, scoped, tag = 'scoped memory for tpu_custom_call.1']
    %6 = vsyncpa [#allocation3], 0
    // Predicated region
    $region2: #{tpu_custom_call.1} parent=1 // pred_check
      _
    $region3: #{tpu_custom_call.1} parent=1 // pred_check_branch
      %8 = sbr.rel (0) target = $region5
    $region4: #{tpu_custom_call.1} parent=1 // pred_region
      _
    $region5: #{tpu_custom_call.1} parent=1 // pred_fallthru
      _
    %v9 = vld [vmem:[%s0] sm:$0xff]
    %v10 = vlaneseq
    %v11 = vand.u32 %v10, 127
    %12 = vset.pattern.permute.xlu0 0
    %13 = vperm.xlu0 %12, %v9
    %v14 = vpop.permute.xlu0 %13
    %vm15 = vcmp.eq.s32.totalorder %v14, %v11
    %vm16 = vcmp.lt.s32.totalorder %v11, 10
    %vm17 = vmand %vm15, %vm16
    %v18 = vsel %vm17, 1, 0
    %v19 = vcvt.s32.f32 %v18
    %20 = vst [vmem:[#allocation2] sm:$0xff] %v19
    // Predicated region
    $region6: #{tpu_custom_call.1} parent=1 // pred_check
      _
    $region7: #{tpu_custom_call.1} parent=1 // pred_check_branch
      %22 = sbr.rel (0) target = $region9
    $region8: #{tpu_custom_call.1} parent=1 // pred_region
      %s24 = ssub.s32 128, 128
      %25 = vsyncadd [#allocation3], %s24
      %s27 = sshll.u32 [#allocation2], 4
      %s28 = int_to_ptr.vmem [resolvable:$true] %s27
      %30 = dma.vmem_to_hbm [thread:$0]  %s28, 128, %s1, [#allocation3]
    $region9: #{tpu_custom_call.1} parent=1 // pred_fallthru
      _
    // Predicated region
    $region10: #{tpu_custom_call.1} parent=1 // pred_check
      _
    $region11: #{tpu_custom_call.1} parent=1 // pred_check_branch
      %32 = sbr.rel (0) target = $region13
    $region12: #{tpu_custom_call.1} parent=1 // pred_region
      %33 = dma.done [#allocation3], 128
    $region13: #{tpu_custom_call.1} parent=1 // pred_fallthru
      _
    %34 = vsyncpa [#allocation3], 1

</llo_original>
